<compile_context>
chip_gen: v6e
topology: v6e:2x2x1
jax: 0.10.0
libtpu: 0.0.40
codegen_flags: <defaults>
</compile_context>

<pallas_src>
import math
import re
from functools import partial
from typing import Dict, NamedTuple, Sequence

import numpy as np
import jax
import jax.numpy as jnp
from jax.experimental import pallas as pl
from jax.experimental.pallas import tpu as pltpu

EPS = 1e-06


class TokenGroup(NamedTuple):
    tokens: jnp.ndarray
    mask: jnp.ndarray


def regex_match(regex_keys, x):
    return any(re.match(r_key, x) for r_key in regex_keys)


def regex_filter(regex_keys, xs):
    return list(filter(lambda x: regex_match(regex_keys, x), xs))


# ----------------------------- Pallas kernel ------------------------------- #
def _phi(x):
    """Standard-normal CDF via Abramowitz-Stegun 7.1.26 erf (|err| < 1.5e-7).

    One EUP exp per element (EUP slot is otherwise idle here) instead of
    O(n_bins) VALU threshold compares.
    """
    z = x * 0.7071067811865476
    az = jnp.abs(z)
    t = 1.0 / (1.0 + 0.3275911 * az)
    poly = t * (0.254829592 + t * (-0.284496736 + t * (1.421413741
                + t * (-1.453152027 + t * 1.061405429))))
    erf_abs = 1.0 - poly * jnp.exp(-az * az)
    erf = jnp.where(z >= 0.0, erf_abs, -erf_abs)
    return 0.5 * (1.0 + erf)


def _bin_tokenize_kernel(x_ref, out_ref, *, low, high, n_bins, d_dim,
                         bin_mode, thr_inner, thr_last):
    # x_ref:   (tile_n, D')             input (native dtype; cast to f32 here)
    # out_ref: (tile_n, D' * n_bins)    lane-dense one-hot tokens
    x = x_ref[...].astype(jnp.float32)                        # (tile_n, D')

    if bin_mode == 'uniform':
        xc = jnp.clip(x, low + EPS, high - EPS)
        scale = float(n_bins) / (float(high) - float(low))
        # Arithmetic bin index (no threshold tensors, no cross-lane reduce).
        # May differ by one bin from threshold-compare for values exactly on
        # an edge when (high-low)/n_bins is not exactly representable; exact
        # for the common low=0, high=1 case.
        idx = jnp.floor((xc - float(low)) * scale).astype(jnp.int32)
        idx = jnp.clip(idx, 0, n_bins - 1)
    elif bin_mode == 'normal_cdf':
        # Arithmetic index through the normal CDF (EUP) -- replaces the
        # 2*(n_bins-1) VALU threshold passes for large n_bins.  Can differ by
        # +/-1 bin for values within ~1.5e-7 (CDF space) of an interior edge.
        scale = float(n_bins) / (1.0 - 2.0 * EPS)
        idx = jnp.floor((_phi(x) - EPS) * scale).astype(jnp.int32)
        idx = jnp.clip(idx, 0, n_bins - 1)
        # torch argmax-over-all-zero-one-hot semantics: x >= last threshold -> 0
        idx = jnp.where(x >= thr_last, 0, idx)
    else:  # 'normal_exact' (small n_bins): exact unrolled threshold counting
        cnt = jnp.zeros(x.shape, dtype=jnp.int32)
        for thr in thr_inner:                                  # python floats
            cnt = cnt + (x >= thr).astype(jnp.int32)
        idx = jnp.where(x >= thr_last, 0, cnt)

    tile_n = x.shape[0]
    bins = jax.lax.broadcasted_iota(jnp.int32, (tile_n, n_bins), 1)
    # Per-dim one-hot slice stores: O(D*n_bins) VPU work per row, no full
    # (tile_n, D*n_bins) i32 iota or D-deep OR chain kept live.  Stores are
    # full-lane aligned whenever n_bins % 128 == 0 (the common octo case);
    # otherwise the wrapper's row folding keeps the HBM stream lane-dense.
    for d in range(d_dim):
        out_ref[:, d * n_bins:(d + 1) * n_bins] = (
            bins == idx[:, d:d + 1]).astype(out_ref.dtype)


# ----------------------------- Wrapper ------------------------------------- #
def _round_up(x, m):
    return -(-x // m) * m


def _is_v7x():
    try:
        kind = jax.devices()[0].device_kind.lower()
    except Exception:
        kind = ""
    return ("v7" in kind) or ("7x" in kind)


def _choose_tile_n(n_rows, d_dim, n_bins, in_itemsize, out_itemsize,
                   requested, budget, is_v7):
    # Sublane alignment of the row tile for the narrowest dtype involved:
    # 8 (32-bit), 16 (16-bit), 32 (8-bit).
    align = max(8, 32 // max(1, min(in_itemsize, out_itemsize)))
    width = d_dim * n_bins
    d_lane = _round_up(d_dim, 128)
    w_lane = _round_up(width, 128)
    nb_lane = _round_up(n_bins, 128)
    # Per-row VMEM bytes: double-buffered input + output blocks PLUS in-kernel
    # temporaries (f32 x, i32 idx, i32 bin-iota, compare temp) -- review fix.
    row_bytes = (2 * d_lane * in_itemsize          # input double buffer
                 + 2 * w_lane * out_itemsize       # output double buffer
                 + 2 * d_lane * 4                  # f32 x + i32 idx
                 + 2 * nb_lane * 4)                # bin iota + compare temp
    t = max(align, (budget // row_bytes) // align * align)
    if requested is not None:
        t = min(t, max(align, (int(requested) // align) * align))
    # Megacore split only where it helps: v7x (2 TCs) and large N.  On
    # v5e/v6e (1 TC) extra grid steps are pure ~0.35us/step overhead.
    if is_v7 and n_rows > 65536:
        t = min(t, max(512, _round_up((n_rows + 1) // 2, align)))
    if n_rows <= t:
        return n_rows            # single full-extent block (always legal)
    return t


def bin_tokenize_pallas(x_flat, thresholds, *, low, high, n_bins, bin_type,
                        tile_n=None, token_dtype=jnp.int8):
    """x_flat: (N, D) float array. Returns (N, D*n_bins) one-hot tokens."""
    n_rows, d_dim = x_flat.shape
    width = d_dim * n_bins

    # Row folding: fold r consecutive rows into the lane axis so the output
    # block width r*width is a multiple of 128 -> unmasked lane-dense HBM
    # stores.  Pure contiguous reshapes in the wrapper; kernel just sees r*D
    # "dims" per folded row.
    fold = 1
    if width % 128 != 0:
        r = 128 // math.gcd(width, 128)
        if r > 1 and n_rows % r == 0 and r * d_dim <= 256:
            fold = r
    if fold > 1:
        x_flat = x_flat.reshape(n_rows // fold, fold * d_dim)
    n_rows_k, d_k = x_flat.shape
    width_k = d_k * n_bins

    # Generation-specific VMEM policy (v5e/v6e: 128 MiB physical; v7x: 64 MiB).
    is_v7 = _is_v7x()
    if is_v7:
        budget, vmem_limit = 20 << 20, 32 << 20
    else:
        budget, vmem_limit = 48 << 20, 64 << 20

    out_itemsize = jnp.dtype(token_dtype).itemsize
    tn = _choose_tile_n(n_rows_k, d_k, n_bins, x_flat.dtype.itemsize,
                        out_itemsize, tile_n, budget, is_v7)
    # cdiv grid, no input pad, no output slice: the last (partial) block reads
    # some stale VMEM rows and their writes are dropped by Pallas.
    grid_n = pl.cdiv(n_rows_k, tn)

    # Thresholds are static per-tokenizer constants -> close over them.
    if bin_type == 'uniform':
        bin_mode, thr_inner, thr_last = 'uniform', (), 0.0
    else:
        thr = np.asarray(jax.device_get(thresholds), dtype=np.float32)
        thr_last = float(thr[-1])
        if n_bins <= 64:
            bin_mode = 'normal_exact'
            thr_inner = tuple(float(t) for t in thr[1:-1])
        else:
            bin_mode, thr_inner = 'normal_cdf', ()

    kernel = partial(
        _bin_tokenize_kernel,
        low=float(low), high=float(high), n_bins=int(n_bins), d_dim=int(d_k),
        bin_mode=bin_mode, thr_inner=thr_inner, thr_last=thr_last,
    )

    out = pl.pallas_call(
        kernel,
        out_shape=jax.ShapeDtypeStruct((n_rows_k, width_k), token_dtype),
        grid_spec=pltpu.PrefetchScalarGridSpec(
            num_scalar_prefetch=0,
            grid=(grid_n,),
            in_specs=[pl.BlockSpec((tn, d_k), lambda i: (i, 0))],
            out_specs=pl.BlockSpec((tn, width_k), lambda i: (i, 0)),
        ),
        compiler_params=pltpu.CompilerParams(
            dimension_semantics=("parallel",),
            vmem_limit_bytes=vmem_limit,
        ),
    )(x_flat)

    # Undo the row fold (contiguous, layout-preserving reshape).
    return out.reshape(n_rows, width)


# ----------------------------- Module wrapper ------------------------------ #
class LowdimObsTokenizer:
    def __init__(self, n_bins: int, env_observation_shapes: Dict = {},
                 bin_type: str = 'uniform', low: float = 0.0, high: float = 1.0,
                 obs_stack_keys: Sequence[str] = tuple(), discretize: bool = False,
                 proper_pad_mask: bool = True, tile_n: int = None,
                 token_dtype=jnp.int8):
        self.n_bins = n_bins
        self.bin_type = bin_type
        self.low = low
        self.high = high
        self.obs_stack_keys = obs_stack_keys
        self.discretize = discretize
        self.proper_pad_mask = proper_pad_mask
        self.env_observation_shapes = env_observation_shapes
        self.tile_n = tile_n
        # One-hot tokens hold only 0/1, so int8 is lossless; torch emits int64.
        # Contract change: widen downstream if a consumer relies on the dtype.
        self.token_dtype = token_dtype
        if bin_type == 'uniform':
            self.thresholds = jnp.linspace(low, high, n_bins + 1)
        elif bin_type == 'normal':
            from jax.scipy.stats import norm
            self.thresholds = norm.ppf(jnp.linspace(EPS, 1 - EPS, n_bins + 1))
        else:
            raise ValueError(f'Binning type {bin_type} not supported in BinTokenizer.')

    def __call__(self, observations: Dict[str, jnp.ndarray]):
        assert self.obs_stack_keys, 'Need to specify observation keys to tokenize.'
        if len(regex_filter(self.obs_stack_keys, sorted(observations.keys()))) == 0:
            assert self.proper_pad_mask, 'Cannot skip unless using proper pad mask.'
            return None
        tokenizer_inputs = []
        for o_key in self.obs_stack_keys:
            for key in filter(re.compile(o_key).match, sorted(observations.keys())):
                assert len(observations[key].shape) == 3, \
                    f'Only supports non-spatial inputs but {key} has shape {observations[key].shape}.'
                tokenizer_inputs.append(observations[key])
        tokenizer_inputs = jnp.concatenate(tokenizer_inputs, axis=-1)   # (B, T, D)

        if self.discretize:
            B, T, D = tokenizer_inputs.shape
            one_hot_2d = bin_tokenize_pallas(
                tokenizer_inputs.reshape(B * T, D), self.thresholds,
                low=self.low, high=self.high, n_bins=self.n_bins,
                bin_type=self.bin_type, tile_n=self.tile_n,
                token_dtype=self.token_dtype,
            )                                                            # (N, D*n_bins)
            tokens = one_hot_2d.reshape(B, T, D, self.n_bins)            # contiguous reshape
        else:
            # no compute: just an expand_dims, kept in plain JAX glue
            tokens = tokenizer_inputs[..., None]
        mask = jnp.ones(tokens.shape[:-1], dtype=jnp.float32)
        return TokenGroup(tokens, mask)


# ----------------------------- Reference (pure JAX) ------------------------ #
def _reference_discretize(x, thresholds, n_bins, low, high, uniform):
    if uniform:
        x = jnp.clip(x, low + EPS, high - EPS)
    xe = x[..., None]
    oh = ((xe < thresholds[1:]) & (xe >= thresholds[:-1])).astype(jnp.uint8)
    idx = jnp.argmax(oh, axis=-1)
    return jax.nn.one_hot(idx, n_bins, dtype=jnp.int32)


if __name__ == "__main__":
    key = jax.random.PRNGKey(0)
    B, T = 2, 8

    k1, k2 = jax.random.split(key)
    observations = {
        "proprio_arm": jax.random.uniform(k1, (B, T, 4), dtype=jnp.float32),
        "proprio_gripper": jax.random.uniform(k2, (B, T, 2), dtype=jnp.float32),
    }
    x_cat = jnp.concatenate(
        [observations["proprio_arm"], observations["proprio_gripper"]], axis=-1)

    # --- uniform bins, n_bins=16 (width 96 -> row-folded lane-dense output) ---
    tok16 = LowdimObsTokenizer(n_bins=16, bin_type='uniform', low=0.0, high=1.0,
                               obs_stack_keys=("proprio.*",), discretize=True)
    out16 = tok16(observations)
    jax.block_until_ready(out16.tokens)
    jax.block_until_ready(out16.mask)
    ref16 = _reference_discretize(x_cat, tok16.thresholds, 16, 0.0, 1.0, uniform=True)
    assert out16.tokens.shape == (B, T, 6, 16), out16.tokens.shape
    assert out16.mask.shape == (B, T, 6), out16.mask.shape
    assert bool(jnp.all(out16.tokens == ref16)), "uniform n_bins=16 mismatch vs reference"
    assert bool(jnp.all(out16.mask == 1.0))

    # --- uniform bins, n_bins=128 (aligned per-dim slice-store path) ---
    tok128 = LowdimObsTokenizer(n_bins=128, bin_type='uniform', low=0.0, high=1.0,
                                obs_stack_keys=("proprio.*",), discretize=True)
    out128 = tok128(observations)
    jax.block_until_ready(out128.tokens)
    ref128 = _reference_discretize(x_cat, tok128.thresholds, 128, 0.0, 1.0, uniform=True)
    assert bool(jnp.all(out128.tokens == ref128)), "uniform n_bins=128 mismatch vs reference"

    # --- normal bins, n_bins=16 (exact threshold counting, incl. out-of-range) ---
    obs_n = {
        "proprio_arm": observations["proprio_arm"].at[0, 0, 0].set(10.0).at[0, 0, 1].set(-10.0),
        "proprio_gripper": observations["proprio_gripper"],
    }
    x_cat_n = jnp.concatenate(
        [obs_n["proprio_arm"], obs_n["proprio_gripper"]], axis=-1)
    tok_n = LowdimObsTokenizer(n_bins=16, bin_type='normal',
                               obs_stack_keys=("proprio.*",), discretize=True)
    out_n = tok_n(obs_n)
    jax.block_until_ready(out_n.tokens)
    ref_n = _reference_discretize(x_cat_n, tok_n.thresholds, 16,
                                  tok_n.low, tok_n.high, uniform=False)
    assert bool(jnp.all(out_n.tokens == ref_n)), "normal n_bins=16 mismatch vs reference"

    # --- normal bins, n_bins=256 (CDF-arithmetic path; allow +/-1 at exact edges) ---
    tok_c = LowdimObsTokenizer(n_bins=256, bin_type='normal',
                               obs_stack_keys=("proprio.*",), discretize=True)
    out_c = tok_c(obs_n)
    jax.block_until_ready(out_c.tokens)
    ref_c = _reference_discretize(x_cat_n, tok_c.thresholds, 256,
                                  tok_c.low, tok_c.high, uniform=False)
    idx_k = jnp.argmax(out_c.tokens.astype(jnp.int32), axis=-1)
    idx_r = jnp.argmax(ref_c, axis=-1)
    assert bool(jnp.all(jnp.sum(out_c.tokens.astype(jnp.int32), axis=-1) == 1))
    assert int(jnp.max(jnp.abs(idx_k - idx_r))) <= 1, "normal CDF path off by >1 bin"
    assert float(jnp.mean((idx_k != idx_r).astype(jnp.float32))) <= 0.01, \
        "normal CDF path mismatch fraction too high"

    # --- non-discretize path (pure expand_dims, no kernel needed) ---
    tok_plain = LowdimObsTokenizer(n_bins=16, obs_stack_keys=("proprio.*",),
                                   discretize=False)(observations)
    jax.block_until_ready(tok_plain.tokens)
    assert tok_plain.tokens.shape == (B, T, 6, 1)

    print("KERNEL_OK")
</pallas_src>

<mosaic_0001>
module attributes {stable_mosaic.version = 11 : i64} {
  func.func @_bin_tokenize_kernel(%arg0: i32, %arg1: memref<4x24xf32, #tpu.memory_space<vmem>>, %arg2: memref<4x384xi8, #tpu.memory_space<vmem>>) attributes {dimension_semantics = [#tpu.dimension_semantics<parallel>], iteration_bounds = array<i64: 1>, scalar_prefetch = 0 : i64, scratch_operands = 0 : i64, tpu.core_type = #tpu.core_type<tc>, window_params = [{transform_indices = @transform_0, window_bounds = array<i64: 4, 24>}, {transform_indices = @transform_1, window_bounds = array<i64: 4, 384>}]} {
    %c0 = arith.constant 0 : index
    %c0_0 = arith.constant 0 : index
    %0 = vector.load %arg1[%c0, %c0_0] : memref<4x24xf32, #tpu.memory_space<vmem>>, vector<4x24xf32>
    %cst = arith.constant 9.99999997E-7 : f32
    %cst_1 = arith.constant 0.999998986 : f32
    %1 = vector.broadcast %cst : f32 to vector<4x24xf32>
    %2 = arith.maximumf %1, %0 : vector<4x24xf32>
    %3 = vector.broadcast %cst_1 : f32 to vector<4x24xf32>
    %4 = arith.minimumf %3, %2 : vector<4x24xf32>
    %cst_2 = arith.constant 0.000000e+00 : f32
    %5 = vector.broadcast %cst_2 : f32 to vector<4x24xf32>
    %6 = arith.subf %4, %5 : vector<4x24xf32>
    %cst_3 = arith.constant 1.600000e+01 : f32
    %7 = vector.broadcast %cst_3 : f32 to vector<4x24xf32>
    %8 = arith.mulf %6, %7 : vector<4x24xf32>
    %9 = math.floor %8 : vector<4x24xf32>
    %10 = arith.fptosi %9 : vector<4x24xf32> to vector<4x24xi32>
    %c0_i32 = arith.constant 0 : i32
    %c15_i32 = arith.constant 15 : i32
    %11 = vector.broadcast %c0_i32 : i32 to vector<4x24xi32>
    %12 = arith.maxsi %11, %10 : vector<4x24xi32>
    %13 = vector.broadcast %c15_i32 : i32 to vector<4x24xi32>
    %14 = arith.minsi %13, %12 : vector<4x24xi32>
    %15 = tpu.iota {dimensions = array<i32: 1>} : vector<4x16xi32>
    %16 = vector.extract_strided_slice %14 {offsets = [0, 0], sizes = [4, 1], strides = [1, 1]} : vector<4x24xi32> to vector<4x1xi32>
    %17 = vector.broadcast %16 : vector<4x1xi32> to vector<4x16xi32>
    %18 = arith.cmpi eq, %15, %17 : vector<4x16xi32>
    %19 = arith.extui %18 : vector<4x16xi1> to vector<4x16xi8>
    %c0_4 = arith.constant 0 : index
    %c0_5 = arith.constant 0 : index
    %20 = vector.load %arg2[%c0_4, %c0_5] : memref<4x384xi8, #tpu.memory_space<vmem>>, vector<4x16xi8>
    tpu.vector_store %arg2[%c0_4, %c0_5], %19 {strides = array<i32>} : memref<4x384xi8, #tpu.memory_space<vmem>>, vector<4x16xi8>,
    %21 = vector.extract_strided_slice %14 {offsets = [0, 1], sizes = [4, 1], strides = [1, 1]} : vector<4x24xi32> to vector<4x1xi32>
    %22 = vector.broadcast %21 : vector<4x1xi32> to vector<4x16xi32>
    %23 = arith.cmpi eq, %15, %22 : vector<4x16xi32>
    %24 = arith.extui %23 : vector<4x16xi1> to vector<4x16xi8>
    %c0_6 = arith.constant 0 : index
    %c16 = arith.constant 16 : index
    %25 = vector.load %arg2[%c0_6, %c16] : memref<4x384xi8, #tpu.memory_space<vmem>>, vector<4x16xi8>
    tpu.vector_store %arg2[%c0_6, %c16], %24 {strides = array<i32>} : memref<4x384xi8, #tpu.memory_space<vmem>>, vector<4x16xi8>,
    %26 = vector.extract_strided_slice %14 {offsets = [0, 2], sizes = [4, 1], strides = [1, 1]} : vector<4x24xi32> to vector<4x1xi32>
    %27 = vector.broadcast %26 : vector<4x1xi32> to vector<4x16xi32>
    %28 = arith.cmpi eq, %15, %27 : vector<4x16xi32>
    %29 = arith.extui %28 : vector<4x16xi1> to vector<4x16xi8>
    %c0_7 = arith.constant 0 : index
    %c32 = arith.constant 32 : index
    %30 = vector.load %arg2[%c0_7, %c32] : memref<4x384xi8, #tpu.memory_space<vmem>>, vector<4x16xi8>
    tpu.vector_store %arg2[%c0_7, %c32], %29 {strides = array<i32>} : memref<4x384xi8, #tpu.memory_space<vmem>>, vector<4x16xi8>,
    %31 = vector.extract_strided_slice %14 {offsets = [0, 3], sizes = [4, 1], strides = [1, 1]} : vector<4x24xi32> to vector<4x1xi32>
    %32 = vector.broadcast %31 : vector<4x1xi32> to vector<4x16xi32>
    %33 = arith.cmpi eq, %15, %32 : vector<4x16xi32>
    %34 = arith.extui %33 : vector<4x16xi1> to vector<4x16xi8>
    %c0_8 = arith.constant 0 : index
    %c48 = arith.constant 48 : index
    %35 = vector.load %arg2[%c0_8, %c48] : memref<4x384xi8, #tpu.memory_space<vmem>>, vector<4x16xi8>
    tpu.vector_store %arg2[%c0_8, %c48], %34 {strides = array<i32>} : memref<4x384xi8, #tpu.memory_space<vmem>>, vector<4x16xi8>,
    %36 = vector.extract_strided_slice %14 {offsets = [0, 4], sizes = [4, 1], strides = [1, 1]} : vector<4x24xi32> to vector<4x1xi32>
    %37 = vector.broadcast %36 : vector<4x1xi32> to vector<4x16xi32>
    %38 = arith.cmpi eq, %15, %37 : vector<4x16xi32>
    %39 = arith.extui %38 : vector<4x16xi1> to vector<4x16xi8>
    %c0_9 = arith.constant 0 : index
    %c64 = arith.constant 64 : index
    %40 = vector.load %arg2[%c0_9, %c64] : memref<4x384xi8, #tpu.memory_space<vmem>>, vector<4x16xi8>
    tpu.vector_store %arg2[%c0_9, %c64], %39 {strides = array<i32>} : memref<4x384xi8, #tpu.memory_space<vmem>>, vector<4x16xi8>,
    %41 = vector.extract_strided_slice %14 {offsets = [0, 5], sizes = [4, 1], strides = [1, 1]} : vector<4x24xi32> to vector<4x1xi32>
    %42 = vector.broadcast %41 : vector<4x1xi32> to vector<4x16xi32>
    %43 = arith.cmpi eq, %15, %42 : vector<4x16xi32>
    %44 = arith.extui %43 : vector<4x16xi1> to vector<4x16xi8>
    %c0_10 = arith.constant 0 : index
    %c80 = arith.constant 80 : index
    %45 = vector.load %arg2[%c0_10, %c80] : memref<4x384xi8, #tpu.memory_space<vmem>>, vector<4x16xi8>
    tpu.vector_store %arg2[%c0_10, %c80], %44 {strides = array<i32>} : memref<4x384xi8, #tpu.memory_space<vmem>>, vector<4x16xi8>,
    %46 = vector.extract_strided_slice %14 {offsets = [0, 6], sizes = [4, 1], strides = [1, 1]} : vector<4x24xi32> to vector<4x1xi32>
    %47 = vector.broadcast %46 : vector<4x1xi32> to vector<4x16xi32>
    %48 = arith.cmpi eq, %15, %47 : vector<4x16xi32>
    %49 = arith.extui %48 : vector<4x16xi1> to vector<4x16xi8>
    %c0_11 = arith.constant 0 : index
    %c96 = arith.constant 96 : index
    %50 = vector.load %arg2[%c0_11, %c96] : memref<4x384xi8, #tpu.memory_space<vmem>>, vector<4x16xi8>
    tpu.vector_store %arg2[%c0_11, %c96], %49 {strides = array<i32>} : memref<4x384xi8, #tpu.memory_space<vmem>>, vector<4x16xi8>,
    %51 = vector.extract_strided_slice %14 {offsets = [0, 7], sizes = [4, 1], strides = [1, 1]} : vector<4x24xi32> to vector<4x1xi32>
    %52 = vector.broadcast %51 : vector<4x1xi32> to vector<4x16xi32>
    %53 = arith.cmpi eq, %15, %52 : vector<4x16xi32>
    %54 = arith.extui %53 : vector<4x16xi1> to vector<4x16xi8>
    %c0_12 = arith.constant 0 : index
    %c112 = arith.constant 112 : index
    %55 = vector.load %arg2[%c0_12, %c112] : memref<4x384xi8, #tpu.memory_space<vmem>>, vector<4x16xi8>
    tpu.vector_store %arg2[%c0_12, %c112], %54 {strides = array<i32>} : memref<4x384xi8, #tpu.memory_space<vmem>>, vector<4x16xi8>,
    %56 = vector.extract_strided_slice %14 {offsets = [0, 8], sizes = [4, 1], strides = [1, 1]} : vector<4x24xi32> to vector<4x1xi32>
    %57 = vector.broadcast %56 : vector<4x1xi32> to vector<4x16xi32>
    %58 = arith.cmpi eq, %15, %57 : vector<4x16xi32>
    %59 = arith.extui %58 : vector<4x16xi1> to vector<4x16xi8>
    %c0_13 = arith.constant 0 : index
    %c128 = arith.constant 128 : index
    %60 = vector.load %arg2[%c0_13, %c128] : memref<4x384xi8, #tpu.memory_space<vmem>>, vector<4x16xi8>
    tpu.vector_store %arg2[%c0_13, %c128], %59 {strides = array<i32>} : memref<4x384xi8, #tpu.memory_space<vmem>>, vector<4x16xi8>,
    %61 = vector.extract_strided_slice %14 {offsets = [0, 9], sizes = [4, 1], strides = [1, 1]} : vector<4x24xi32> to vector<4x1xi32>
    %62 = vector.broadcast %61 : vector<4x1xi32> to vector<4x16xi32>
    %63 = arith.cmpi eq, %15, %62 : vector<4x16xi32>
    %64 = arith.extui %63 : vector<4x16xi1> to vector<4x16xi8>
    %c0_14 = arith.constant 0 : index
    %c144 = arith.constant 144 : index
    %65 = vector.load %arg2[%c0_14, %c144] : memref<4x384xi8, #tpu.memory_space<vmem>>, vector<4x16xi8>
    tpu.vector_store %arg2[%c0_14, %c144], %64 {strides = array<i32>} : memref<4x384xi8, #tpu.memory_space<vmem>>, vector<4x16xi8>,
    %66 = vector.extract_strided_slice %14 {offsets = [0, 10], sizes = [4, 1], strides = [1, 1]} : vector<4x24xi32> to vector<4x1xi32>
    %67 = vector.broadcast %66 : vector<4x1xi32> to vector<4x16xi32>
    %68 = arith.cmpi eq, %15, %67 : vector<4x16xi32>
    %69 = arith.extui %68 : vector<4x16xi1> to vector<4x16xi8>
    %c0_15 = arith.constant 0 : index
    %c160 = arith.constant 160 : index
    %70 = vector.load %arg2[%c0_15, %c160] : memref<4x384xi8, #tpu.memory_space<vmem>>, vector<4x16xi8>
    tpu.vector_store %arg2[%c0_15, %c160], %69 {strides = array<i32>} : memref<4x384xi8, #tpu.memory_space<vmem>>, vector<4x16xi8>,
    %71 = vector.extract_strided_slice %14 {offsets = [0, 11], sizes = [4, 1], strides = [1, 1]} : vector<4x24xi32> to vector<4x1xi32>
    %72 = vector.broadcast %71 : vector<4x1xi32> to vector<4x16xi32>
    %73 = arith.cmpi eq, %15, %72 : vector<4x16xi32>
    %74 = arith.extui %73 : vector<4x16xi1> to vector<4x16xi8>
    %c0_16 = arith.constant 0 : index
    %c176 = arith.constant 176 : index
    %75 = vector.load %arg2[%c0_16, %c176] : memref<4x384xi8, #tpu.memory_space<vmem>>, vector<4x16xi8>
    tpu.vector_store %arg2[%c0_16, %c176], %74 {strides = array<i32>} : memref<4x384xi8, #tpu.memory_space<vmem>>, vector<4x16xi8>,
    %76 = vector.extract_strided_slice %14 {offsets = [0, 12], sizes = [4, 1], strides = [1, 1]} : vector<4x24xi32> to vector<4x1xi32>
    %77 = vector.broadcast %76 : vector<4x1xi32> to vector<4x16xi32>
    %78 = arith.cmpi eq, %15, %77 : vector<4x16xi32>
    %79 = arith.extui %78 : vector<4x16xi1> to vector<4x16xi8>
    %c0_17 = arith.constant 0 : index
    %c192 = arith.constant 192 : index
    %80 = vector.load %arg2[%c0_17, %c192] : memref<4x384xi8, #tpu.memory_space<vmem>>, vector<4x16xi8>
    tpu.vector_store %arg2[%c0_17, %c192], %79 {strides = array<i32>} : memref<4x384xi8, #tpu.memory_space<vmem>>, vector<4x16xi8>,
    %81 = vector.extract_strided_slice %14 {offsets = [0, 13], sizes = [4, 1], strides = [1, 1]} : vector<4x24xi32> to vector<4x1xi32>
    %82 = vector.broadcast %81 : vector<4x1xi32> to vector<4x16xi32>
    %83 = arith.cmpi eq, %15, %82 : vector<4x16xi32>
    %84 = arith.extui %83 : vector<4x16xi1> to vector<4x16xi8>
    %c0_18 = arith.constant 0 : index
    %c208 = arith.constant 208 : index
    %85 = vector.load %arg2[%c0_18, %c208] : memref<4x384xi8, #tpu.memory_space<vmem>>, vector<4x16xi8>
    tpu.vector_store %arg2[%c0_18, %c208], %84 {strides = array<i32>} : memref<4x384xi8, #tpu.memory_space<vmem>>, vector<4x16xi8>,
    %86 = vector.extract_strided_slice %14 {offsets = [0, 14], sizes = [4, 1], strides = [1, 1]} : vector<4x24xi32> to vector<4x1xi32>
    %87 = vector.broadcast %86 : vector<4x1xi32> to vector<4x16xi32>
    %88 = arith.cmpi eq, %15, %87 : vector<4x16xi32>
    %89 = arith.extui %88 : vector<4x16xi1> to vector<4x16xi8>
    %c0_19 = arith.constant 0 : index
    %c224 = arith.constant 224 : index
    %90 = vector.load %arg2[%c0_19, %c224] : memref<4x384xi8, #tpu.memory_space<vmem>>, vector<4x16xi8>
    tpu.vector_store %arg2[%c0_19, %c224], %89 {strides = array<i32>} : memref<4x384xi8, #tpu.memory_space<vmem>>, vector<4x16xi8>,
    %91 = vector.extract_strided_slice %14 {offsets = [0, 15], sizes = [4, 1], strides = [1, 1]} : vector<4x24xi32> to vector<4x1xi32>
    %92 = vector.broadcast %91 : vector<4x1xi32> to vector<4x16xi32>
    %93 = arith.cmpi eq, %15, %92 : vector<4x16xi32>
    %94 = arith.extui %93 : vector<4x16xi1> to vector<4x16xi8>
    %c0_20 = arith.constant 0 : index
    %c240 = arith.constant 240 : index
    %95 = vector.load %arg2[%c0_20, %c240] : memref<4x384xi8, #tpu.memory_space<vmem>>, vector<4x16xi8>
    tpu.vector_store %arg2[%c0_20, %c240], %94 {strides = array<i32>} : memref<4x384xi8, #tpu.memory_space<vmem>>, vector<4x16xi8>,
    %96 = vector.extract_strided_slice %14 {offsets = [0, 16], sizes = [4, 1], strides = [1, 1]} : vector<4x24xi32> to vector<4x1xi32>
    %97 = vector.broadcast %96 : vector<4x1xi32> to vector<4x16xi32>
    %98 = arith.cmpi eq, %15, %97 : vector<4x16xi32>
    %99 = arith.extui %98 : vector<4x16xi1> to vector<4x16xi8>
    %c0_21 = arith.constant 0 : index
    %c256 = arith.constant 256 : index
    %100 = vector.load %arg2[%c0_21, %c256] : memref<4x384xi8, #tpu.memory_space<vmem>>, vector<4x16xi8>
    tpu.vector_store %arg2[%c0_21, %c256], %99 {strides = array<i32>} : memref<4x384xi8, #tpu.memory_space<vmem>>, vector<4x16xi8>,
    %101 = vector.extract_strided_slice %14 {offsets = [0, 17], sizes = [4, 1], strides = [1, 1]} : vector<4x24xi32> to vector<4x1xi32>
    %102 = vector.broadcast %101 : vector<4x1xi32> to vector<4x16xi32>
    %103 = arith.cmpi eq, %15, %102 : vector<4x16xi32>
    %104 = arith.extui %103 : vector<4x16xi1> to vector<4x16xi8>
    %c0_22 = arith.constant 0 : index
    %c272 = arith.constant 272 : index
    %105 = vector.load %arg2[%c0_22, %c272] : memref<4x384xi8, #tpu.memory_space<vmem>>, vector<4x16xi8>
    tpu.vector_store %arg2[%c0_22, %c272], %104 {strides = array<i32>} : memref<4x384xi8, #tpu.memory_space<vmem>>, vector<4x16xi8>,
    %106 = vector.extract_strided_slice %14 {offsets = [0, 18], sizes = [4, 1], strides = [1, 1]} : vector<4x24xi32> to vector<4x1xi32>
    %107 = vector.broadcast %106 : vector<4x1xi32> to vector<4x16xi32>
    %108 = arith.cmpi eq, %15, %107 : vector<4x16xi32>
    %109 = arith.extui %108 : vector<4x16xi1> to vector<4x16xi8>
    %c0_23 = arith.constant 0 : index
    %c288 = arith.constant 288 : index
    %110 = vector.load %arg2[%c0_23, %c288] : memref<4x384xi8, #tpu.memory_space<vmem>>, vector<4x16xi8>
    tpu.vector_store %arg2[%c0_23, %c288], %109 {strides = array<i32>} : memref<4x384xi8, #tpu.memory_space<vmem>>, vector<4x16xi8>,
    %111 = vector.extract_strided_slice %14 {offsets = [0, 19], sizes = [4, 1], strides = [1, 1]} : vector<4x24xi32> to vector<4x1xi32>
    %112 = vector.broadcast %111 : vector<4x1xi32> to vector<4x16xi32>
    %113 = arith.cmpi eq, %15, %112 : vector<4x16xi32>
    %114 = arith.extui %113 : vector<4x16xi1> to vector<4x16xi8>
    %c0_24 = arith.constant 0 : index
    %c304 = arith.constant 304 : index
    %115 = vector.load %arg2[%c0_24, %c304] : memref<4x384xi8, #tpu.memory_space<vmem>>, vector<4x16xi8>
    tpu.vector_store %arg2[%c0_24, %c304], %114 {strides = array<i32>} : memref<4x384xi8, #tpu.memory_space<vmem>>, vector<4x16xi8>,
    %116 = vector.extract_strided_slice %14 {offsets = [0, 20], sizes = [4, 1], strides = [1, 1]} : vector<4x24xi32> to vector<4x1xi32>
    %117 = vector.broadcast %116 : vector<4x1xi32> to vector<4x16xi32>
    %118 = arith.cmpi eq, %15, %117 : vector<4x16xi32>
    %119 = arith.extui %118 : vector<4x16xi1> to vector<4x16xi8>
    %c0_25 = arith.constant 0 : index
    %c320 = arith.constant 320 : index
    %120 = vector.load %arg2[%c0_25, %c320] : memref<4x384xi8, #tpu.memory_space<vmem>>, vector<4x16xi8>
    tpu.vector_store %arg2[%c0_25, %c320], %119 {strides = array<i32>} : memref<4x384xi8, #tpu.memory_space<vmem>>, vector<4x16xi8>,
    %121 = vector.extract_strided_slice %14 {offsets = [0, 21], sizes = [4, 1], strides = [1, 1]} : vector<4x24xi32> to vector<4x1xi32>
    %122 = vector.broadcast %121 : vector<4x1xi32> to vector<4x16xi32>
    %123 = arith.cmpi eq, %15, %122 : vector<4x16xi32>
    %124 = arith.extui %123 : vector<4x16xi1> to vector<4x16xi8>
    %c0_26 = arith.constant 0 : index
    %c336 = arith.constant 336 : index
    %125 = vector.load %arg2[%c0_26, %c336] : memref<4x384xi8, #tpu.memory_space<vmem>>, vector<4x16xi8>
    tpu.vector_store %arg2[%c0_26, %c336], %124 {strides = array<i32>} : memref<4x384xi8, #tpu.memory_space<vmem>>, vector<4x16xi8>,
    %126 = vector.extract_strided_slice %14 {offsets = [0, 22], sizes = [4, 1], strides = [1, 1]} : vector<4x24xi32> to vector<4x1xi32>
    %127 = vector.broadcast %126 : vector<4x1xi32> to vector<4x16xi32>
    %128 = arith.cmpi eq, %15, %127 : vector<4x16xi32>
    %129 = arith.extui %128 : vector<4x16xi1> to vector<4x16xi8>
    %c0_27 = arith.constant 0 : index
    %c352 = arith.constant 352 : index
    %130 = vector.load %arg2[%c0_27, %c352] : memref<4x384xi8, #tpu.memory_space<vmem>>, vector<4x16xi8>
    tpu.vector_store %arg2[%c0_27, %c352], %129 {strides = array<i32>} : memref<4x384xi8, #tpu.memory_space<vmem>>, vector<4x16xi8>,
    %131 = vector.extract_strided_slice %14 {offsets = [0, 23], sizes = [4, 1], strides = [1, 1]} : vector<4x24xi32> to vector<4x1xi32>
    %132 = vector.broadcast %131 : vector<4x1xi32> to vector<4x16xi32>
    %133 = arith.cmpi eq, %15, %132 : vector<4x16xi32>
    %134 = arith.extui %133 : vector<4x16xi1> to vector<4x16xi8>
    %c0_28 = arith.constant 0 : index
    %c368 = arith.constant 368 : index
    %135 = vector.load %arg2[%c0_28, %c368] : memref<4x384xi8, #tpu.memory_space<vmem>>, vector<4x16xi8>
    tpu.vector_store %arg2[%c0_28, %c368], %134 {strides = array<i32>} : memref<4x384xi8, #tpu.memory_space<vmem>>, vector<4x16xi8>,
    return
  }
  func.func @transform_0(%arg0: i32) -> (i32, i32) {
    %c0_i32 = arith.constant 0 : i32
    %c0_i32_0 = arith.constant 0 : i32
    return %arg0, %c0_i32 : i32, i32
  }
  func.func @transform_1(%arg0: i32) -> (i32, i32) {
    %c0_i32 = arith.constant 0 : i32
    %c0_i32_0 = arith.constant 0 : i32
    return %arg0, %c0_i32 : i32, i32
  }
}

</mosaic_0001>

<llo_original>
// kernel: tpu_custom_call.1
$region0: #{tpu_custom_call.1}
  #allocation0 [shape = 'u32[]', space=smem, size = 0x4, offset = 0x4, fixed_abs, tag = 'smem constant byte address 0x4 - core index']
  #allocation1 [shape = 'u32[144,128]{1,0:T(1,128)}', space=vmem, size = 0x12000, scoped, tag = 'internal scratch']
  %s0 = inlined_call_operand.hbm [shape: f32[4,24], index: 0, kind: input, shape index: {}]
  %s1 = inlined_call_operand.hbm [shape: s8[4,384], index: 1, kind: output, shape index: {}]
  %s2 = sld [smem:[#allocation0]]
  $region18: #{tpu_custom_call.1} parent=0
    _
  %s4 = ssub.s32 1, %s2
  %s5 = scalar_select 0, %s4, %s2
  $region1: #{tpu_custom_call.1} parent=0
    #allocation2 [shape = 'u8[2048]{0}', space=vmem, size = 0x800, scoped, tag = 'input window, operand 0, single buffered']
    #allocation3 [shape = 's32[1]{0}', space=sflag, size = 0x4, scoped, tag = 'scoped memory for tpu_custom_call.1']
    #allocation4 [shape = 's32[1]{0}', space=sflag, size = 0x4, scoped, tag = 'scoped memory for tpu_custom_call.1']
    #allocation5 [shape = 'u8[1536]{0}', space=vmem, size = 0x800, scoped, tag = 'output window, operand 0, single buffered']
    %6 = vsyncpa [#allocation3], 0
    %7 = vsyncpa [#allocation4], 0
    // Predicated region
    $region2: #{tpu_custom_call.1} parent=1 // pred_check
      _
    $region3: #{tpu_custom_call.1} parent=1 // pred_check_branch
      %9 = sbr.rel (0) target = $region5
    $region4: #{tpu_custom_call.1} parent=1 // pred_region
      %s11 = ssub.s32 64, 64
      %12 = vsyncadd [#allocation3], %s11
      %s14 = sshll.u32 [#allocation2], 4
      %s15 = int_to_ptr.vmem [resolvable:$true] %s14
      %17 = dma.hbm_to_vmem [thread:$0]  %s0, 64, %s15, [#allocation3]
    $region5: #{tpu_custom_call.1} parent=1 // pred_fallthru
      _
    // Predicated region
    $region6: #{tpu_custom_call.1} parent=1 // pred_check
      _
    $region7: #{tpu_custom_call.1} parent=1 // pred_check_branch
      %19 = sbr.rel (0) target = $region9
    $region8: #{tpu_custom_call.1} parent=1 // pred_region
      %20 = dma.done [#allocation3], 64
    $region9: #{tpu_custom_call.1} parent=1 // pred_fallthru
      _
    %v23 = vld [vmem:[#allocation2] sm:$0xf]
    %v24 = vmax.f32 %v23, 1e-06
    %v25 = vmin.f32 %v24, 0.999999
    %v26 = vmul.f32 %v25, 16.0
    %v27 = vfloor.f32 %v26
    %v28 = vcvt.f32.s32.to.zero.pseudo %v27
    %vm29 = vcmp.gt.s32.totalorder %v28, 0
    %v30 = vsel %vm29, %v28, 0
    %vm31 = vcmp.lt.s32.totalorder %v30, 15
    %v32 = vsel %vm31, %v30, 15
    %v33 = vlaneseq
    %v34 = vand.u32 %v33, 127
    %35 = vset.pattern.permute.xlu0 0
    %36 = vperm.xlu0 %35, %v32
    %v37 = vpop.permute.xlu0 %36
    %vm38 = vcmp.eq.s32.totalorder %v34, %v37
    %vm39 = vmpackc.low %vm38, %vm38
    %vm40 = vmpackc.even %vm39, %vm39
    %v41 = vsel %vm40, 16843009, 0
    %vm42 = vcmask 122880
    %43 = vst.msk [vmem:[#allocation5] sm:$0x1] %vm42, %v41
    %44 = vset.pattern.permute.xlu0 1
    %45 = vperm.xlu0 %44, %v32
    %v46 = vpop.permute.xlu0 %45
    %vm47 = vcmp.eq.s32.totalorder %v34, %v46
    %vm48 = vmpackc.low %vm47, %vm47
    %vm49 = vmpackc.even %vm48, %vm48
    %v50 = vsel %vm49, 16843009, 0
    %v52 = vunpack.c.l.s4 1966171168
    %v53 = vunpack.c.0.s8 %v52
    %v54 = vlaneseq
    %v55 = vshrl.u32 %v54, 7
    %v56 = vsub.s32 %v53, %v55
    %v57 = vrot.slane %v50, %v56
    %v59 = vunpack.c.l.s4 1966171168
    %v60 = vunpack.c.0.s8 %v59
    %v61 = vlaneseq
    %v62 = vshrl.u32 %v61, 7
    %v63 = vsub.s32 %v60, %v62
    %v64 = vrot.slane %v57, %v63
    %65 = vrot.lane.b32.xlu0 %v64, 16
    %v66 = vpop.permute.xlu0 %65
    %vm67 = vcmask 254080
    %68 = vst.msk [vmem:[#allocation5] sm:$0x1] %vm67, %v66
    %69 = vset.pattern.permute.xlu0 2
    %70 = vperm.xlu0 %69, %v32
    %v71 = vpop.permute.xlu0 %70
    %vm72 = vcmp.eq.s32.totalorder %v34, %v71
    %vm73 = vmpackc.low %vm72, %vm72
    %vm74 = vmpackc.even %vm73, %vm73
    %v75 = vsel %vm74, 16843009, 0
    %v77 = vunpack.c.l.s4 1966171168
    %v78 = vunpack.c.0.s8 %v77
    %v79 = vlaneseq
    %v80 = vshrl.u32 %v79, 7
    %v81 = vsub.s32 %v78, %v80
    %v82 = vrot.slane %v75, %v81
    %v84 = vunpack.c.l.s4 1966171168
    %v85 = vunpack.c.0.s8 %v84
    %v86 = vlaneseq
    %v87 = vshrl.u32 %v86, 7
    %v88 = vsub.s32 %v85, %v87
    %v89 = vrot.slane %v82, %v88
    %90 = vrot.lane.b32.xlu0 %v89, 32
    %v91 = vpop.permute.xlu0 %90
    %vm92 = vcmask 385280
    %93 = vst.msk [vmem:[#allocation5] sm:$0x1] %vm92, %v91
    %94 = vset.pattern.permute.xlu0 3
    %95 = vperm.xlu0 %94, %v32
    %v96 = vpop.permute.xlu0 %95
    %vm97 = vcmp.eq.s32.totalorder %v34, %v96
    %vm98 = vmpackc.low %vm97, %vm97
    %vm99 = vmpackc.even %vm98, %vm98
    %v100 = vsel %vm99, 16843009, 0
    %v102 = vunpack.c.l.s4 1966171168
    %v103 = vunpack.c.0.s8 %v102
    %v104 = vlaneseq
    %v105 = vshrl.u32 %v104, 7
    %v106 = vsub.s32 %v103, %v105
    %v107 = vrot.slane %v100, %v106
    %v109 = vunpack.c.l.s4 1966171168
    %v110 = vunpack.c.0.s8 %v109
    %v111 = vlaneseq
    %v112 = vshrl.u32 %v111, 7
    %v113 = vsub.s32 %v110, %v112
    %v114 = vrot.slane %v107, %v113
    %115 = vrot.lane.b32.xlu0 %v114, 48
    %v116 = vpop.permute.xlu0 %115
    %vm117 = vcmask 516480
    %118 = vst.msk [vmem:[#allocation5] sm:$0x1] %vm117, %v116
    %119 = vset.pattern.permute.xlu0 4
    %120 = vperm.xlu0 %119, %v32
    %v121 = vpop.permute.xlu0 %120
    %vm122 = vcmp.eq.s32.totalorder %v34, %v121
    %vm123 = vmpackc.low %vm122, %vm122
    %vm124 = vmpackc.even %vm123, %vm123
    %v125 = vsel %vm124, 16843009, 0
    %v127 = vunpack.c.l.s4 1966171168
    %v128 = vunpack.c.0.s8 %v127
    %v129 = vlaneseq
    %v130 = vshrl.u32 %v129, 7
    %v131 = vsub.s32 %v128, %v130
    %v132 = vrot.slane %v125, %v131
    %v134 = vunpack.c.l.s4 1966171168
    %v135 = vunpack.c.0.s8 %v134
    %v136 = vlaneseq
    %v137 = vshrl.u32 %v136, 7
    %v138 = vsub.s32 %v135, %v137
    %v139 = vrot.slane %v132, %v138
    %140 = vrot.lane.b32.xlu0 %v139, 64
    %v141 = vpop.permute.xlu0 %140
    %vm142 = vcmask 647680
    %143 = vst.msk [vmem:[#allocation5] sm:$0x1] %vm142, %v141
    %144 = vset.pattern.permute.xlu0 5
    %145 = vperm.xlu0 %144, %v32
    %v146 = vpop.permute.xlu0 %145
    %vm147 = vcmp.eq.s32.totalorder %v34, %v146
    %vm148 = vmpackc.low %vm147, %vm147
    %vm149 = vmpackc.even %vm148, %vm148
    %v150 = vsel %vm149, 16843009, 0
    %v152 = vunpack.c.l.s4 1966171168
    %v153 = vunpack.c.0.s8 %v152
    %v154 = vlaneseq
    %v155 = vshrl.u32 %v154, 7
    %v156 = vsub.s32 %v153, %v155
    %v157 = vrot.slane %v150, %v156
    %v159 = vunpack.c.l.s4 1966171168
    %v160 = vunpack.c.0.s8 %v159
    %v161 = vlaneseq
    %v162 = vshrl.u32 %v161, 7
    %v163 = vsub.s32 %v160, %v162
    %v164 = vrot.slane %v157, %v163
    %165 = vrot.lane.b32.xlu0 %v164, 80
    %v166 = vpop.permute.xlu0 %165
    %vm167 = vcmask 778880
    %168 = vst.msk [vmem:[#allocation5] sm:$0x1] %vm167, %v166
    %169 = vset.pattern.permute.xlu0 6
    %170 = vperm.xlu0 %169, %v32
    %v171 = vpop.permute.xlu0 %170
    %vm172 = vcmp.eq.s32.totalorder %v34, %v171
    %vm173 = vmpackc.low %vm172, %vm172
    %vm174 = vmpackc.even %vm173, %vm173
    %v175 = vsel %vm174, 16843009, 0
    %v177 = vunpack.c.l.s4 1966171168
    %v178 = vunpack.c.0.s8 %v177
    %v179 = vlaneseq
    %v180 = vshrl.u32 %v179, 7
    %v181 = vsub.s32 %v178, %v180
    %v182 = vrot.slane %v175, %v181
    %v184 = vunpack.c.l.s4 1966171168
    %v185 = vunpack.c.0.s8 %v184
    %v186 = vlaneseq
    %v187 = vshrl.u32 %v186, 7
    %v188 = vsub.s32 %v185, %v187
    %v189 = vrot.slane %v182, %v188
    %190 = vrot.lane.b32.xlu0 %v189, 96
    %v191 = vpop.permute.xlu0 %190
    %vm192 = vcmask 910080
    %193 = vst.msk [vmem:[#allocation5] sm:$0x1] %vm192, %v191
    %194 = vset.pattern.permute.xlu0 7
    %195 = vperm.xlu0 %194, %v32
    %v196 = vpop.permute.xlu0 %195
    %vm197 = vcmp.eq.s32.totalorder %v34, %v196
    %vm198 = vmpackc.low %vm197, %vm197
    %vm199 = vmpackc.even %vm198, %vm198
    %v200 = vsel %vm199, 16843009, 0
    %v202 = vunpack.c.l.s4 1966171168
    %v203 = vunpack.c.0.s8 %v202
    %v204 = vlaneseq
    %v205 = vshrl.u32 %v204, 7
    %v206 = vsub.s32 %v203, %v205
    %v207 = vrot.slane %v200, %v206
    %v209 = vunpack.c.l.s4 1966171168
    %v210 = vunpack.c.0.s8 %v209
    %v211 = vlaneseq
    %v212 = vshrl.u32 %v211, 7
    %v213 = vsub.s32 %v210, %v212
    %v214 = vrot.slane %v207, %v213
    %215 = vrot.lane.b32.xlu0 %v214, 112
    %v216 = vpop.permute.xlu0 %215
    %vm217 = vcmask 1041280
    %218 = vst.msk [vmem:[#allocation5] sm:$0x1] %vm217, %v216
    %219 = vset.pattern.permute.xlu0 8
    %220 = vperm.xlu0 %219, %v32
    %v221 = vpop.permute.xlu0 %220
    %vm222 = vcmp.eq.s32.totalorder %v34, %v221
    %vm223 = vmpackc.low %vm222, %vm222
    %vm224 = vmpackc.even %vm223, %vm223
    %v225 = vsel %vm224, 16843009, 0
    %226 = vst.msk [vmem:[#allocation5 + $0x1] sm:$0x1] %vm42, %v225
    %227 = vset.pattern.permute.xlu0 9
    %228 = vperm.xlu0 %227, %v32
    %v229 = vpop.permute.xlu0 %228
    %vm230 = vcmp.eq.s32.totalorder %v34, %v229
    %vm231 = vmpackc.low %vm230, %vm230
    %vm232 = vmpackc.even %vm231, %vm231
    %v233 = vsel %vm232, 16843009, 0
    %v235 = vunpack.c.l.s4 1966171168
    %v236 = vunpack.c.0.s8 %v235
    %v237 = vlaneseq
    %v238 = vshrl.u32 %v237, 7
    %v239 = vsub.s32 %v236, %v238
    %v240 = vrot.slane %v233, %v239
    %v242 = vunpack.c.l.s4 1966171168
    %v243 = vunpack.c.0.s8 %v242
    %v244 = vlaneseq
    %v245 = vshrl.u32 %v244, 7
    %v246 = vsub.s32 %v243, %v245
    %v247 = vrot.slane %v240, %v246
    %248 = vrot.lane.b32.xlu0 %v247, 16
    %v249 = vpop.permute.xlu0 %248
    %250 = vst.msk [vmem:[#allocation5 + $0x1] sm:$0x1] %vm67, %v249
    %251 = vset.pattern.permute.xlu0 10
    %252 = vperm.xlu0 %251, %v32
    %v253 = vpop.permute.xlu0 %252
    %vm254 = vcmp.eq.s32.totalorder %v34, %v253
    %vm255 = vmpackc.low %vm254, %vm254
    %vm256 = vmpackc.even %vm255, %vm255
    %v257 = vsel %vm256, 16843009, 0
    %v259 = vunpack.c.l.s4 1966171168
    %v260 = vunpack.c.0.s8 %v259
    %v261 = vlaneseq
    %v262 = vshrl.u32 %v261, 7
    %v263 = vsub.s32 %v260, %v262
    %v264 = vrot.slane %v257, %v263
    %v266 = vunpack.c.l.s4 1966171168
    %v267 = vunpack.c.0.s8 %v266
    %v268 = vlaneseq
    %v269 = vshrl.u32 %v268, 7
    %v270 = vsub.s32 %v267, %v269
    %v271 = vrot.slane %v264, %v270
    %272 = vrot.lane.b32.xlu0 %v271, 32
    %v273 = vpop.permute.xlu0 %272
    %274 = vst.msk [vmem:[#allocation5 + $0x1] sm:$0x1] %vm92, %v273
    %275 = vset.pattern.permute.xlu0 11
    %276 = vperm.xlu0 %275, %v32
    %v277 = vpop.permute.xlu0 %276
    %vm278 = vcmp.eq.s32.totalorder %v34, %v277
    %vm279 = vmpackc.low %vm278, %vm278
    %vm280 = vmpackc.even %vm279, %vm279
    %v281 = vsel %vm280, 16843009, 0
    %v283 = vunpack.c.l.s4 1966171168
    %v284 = vunpack.c.0.s8 %v283
    %v285 = vlaneseq
    %v286 = vshrl.u32 %v285, 7
    %v287 = vsub.s32 %v284, %v286
    %v288 = vrot.slane %v281, %v287
    %v290 = vunpack.c.l.s4 1966171168
    %v291 = vunpack.c.0.s8 %v290
    %v292 = vlaneseq
    %v293 = vshrl.u32 %v292, 7
    %v294 = vsub.s32 %v291, %v293
    %v295 = vrot.slane %v288, %v294
    %296 = vrot.lane.b32.xlu0 %v295, 48
    %v297 = vpop.permute.xlu0 %296
    %298 = vst.msk [vmem:[#allocation5 + $0x1] sm:$0x1] %vm117, %v297
    %299 = vset.pattern.permute.xlu0 12
    %300 = vperm.xlu0 %299, %v32
    %v301 = vpop.permute.xlu0 %300
    %vm302 = vcmp.eq.s32.totalorder %v34, %v301
    %vm303 = vmpackc.low %vm302, %vm302
    %vm304 = vmpackc.even %vm303, %vm303
    %v305 = vsel %vm304, 16843009, 0
    %v307 = vunpack.c.l.s4 1966171168
    %v308 = vunpack.c.0.s8 %v307
    %v309 = vlaneseq
    %v310 = vshrl.u32 %v309, 7
    %v311 = vsub.s32 %v308, %v310
    %v312 = vrot.slane %v305, %v311
    %v314 = vunpack.c.l.s4 1966171168
    %v315 = vunpack.c.0.s8 %v314
    %v316 = vlaneseq
    %v317 = vshrl.u32 %v316, 7
    %v318 = vsub.s32 %v315, %v317
    %v319 = vrot.slane %v312, %v318
    %320 = vrot.lane.b32.xlu0 %v319, 64
    %v321 = vpop.permute.xlu0 %320
    %322 = vst.msk [vmem:[#allocation5 + $0x1] sm:$0x1] %vm142, %v321
    %323 = vset.pattern.permute.xlu0 13
    %324 = vperm.xlu0 %323, %v32
    %v325 = vpop.permute.xlu0 %324
    %vm326 = vcmp.eq.s32.totalorder %v34, %v325
    %vm327 = vmpackc.low %vm326, %vm326
    %vm328 = vmpackc.even %vm327, %vm327
    %v329 = vsel %vm328, 16843009, 0
    %v331 = vunpack.c.l.s4 1966171168
    %v332 = vunpack.c.0.s8 %v331
    %v333 = vlaneseq
    %v334 = vshrl.u32 %v333, 7
    %v335 = vsub.s32 %v332, %v334
    %v336 = vrot.slane %v329, %v335
    %v338 = vunpack.c.l.s4 1966171168
    %v339 = vunpack.c.0.s8 %v338
    %v340 = vlaneseq
    %v341 = vshrl.u32 %v340, 7
    %v342 = vsub.s32 %v339, %v341
    %v343 = vrot.slane %v336, %v342
    %344 = vrot.lane.b32.xlu0 %v343, 80
    %v345 = vpop.permute.xlu0 %344
    %346 = vst.msk [vmem:[#allocation5 + $0x1] sm:$0x1] %vm167, %v345
    %347 = vset.pattern.permute.xlu0 14
    %348 = vperm.xlu0 %347, %v32
    %v349 = vpop.permute.xlu0 %348
    %vm350 = vcmp.eq.s32.totalorder %v34, %v349
    %vm351 = vmpackc.low %vm350, %vm350
    %vm352 = vmpackc.even %vm351, %vm351
    %v353 = vsel %vm352, 16843009, 0
    %v355 = vunpack.c.l.s4 1966171168
    %v356 = vunpack.c.0.s8 %v355
    %v357 = vlaneseq
    %v358 = vshrl.u32 %v357, 7
    %v359 = vsub.s32 %v356, %v358
    %v360 = vrot.slane %v353, %v359
    %v362 = vunpack.c.l.s4 1966171168
    %v363 = vunpack.c.0.s8 %v362
    %v364 = vlaneseq
    %v365 = vshrl.u32 %v364, 7
    %v366 = vsub.s32 %v363, %v365
    %v367 = vrot.slane %v360, %v366
    %368 = vrot.lane.b32.xlu0 %v367, 96
    %v369 = vpop.permute.xlu0 %368
    %370 = vst.msk [vmem:[#allocation5 + $0x1] sm:$0x1] %vm192, %v369
    %371 = vset.pattern.permute.xlu0 15
    %372 = vperm.xlu0 %371, %v32
    %v373 = vpop.permute.xlu0 %372
    %vm374 = vcmp.eq.s32.totalorder %v34, %v373
    %vm375 = vmpackc.low %vm374, %vm374
    %vm376 = vmpackc.even %vm375, %vm375
    %v377 = vsel %vm376, 16843009, 0
    %v379 = vunpack.c.l.s4 1966171168
    %v380 = vunpack.c.0.s8 %v379
    %v381 = vlaneseq
    %v382 = vshrl.u32 %v381, 7
    %v383 = vsub.s32 %v380, %v382
    %v384 = vrot.slane %v377, %v383
    %v386 = vunpack.c.l.s4 1966171168
    %v387 = vunpack.c.0.s8 %v386
    %v388 = vlaneseq
    %v389 = vshrl.u32 %v388, 7
    %v390 = vsub.s32 %v387, %v389
    %v391 = vrot.slane %v384, %v390
    %392 = vrot.lane.b32.xlu0 %v391, 112
    %v393 = vpop.permute.xlu0 %392
    %394 = vst.msk [vmem:[#allocation5 + $0x1] sm:$0x1] %vm217, %v393
    %395 = vset.pattern.permute.xlu0 16
    %396 = vperm.xlu0 %395, %v32
    %v397 = vpop.permute.xlu0 %396
    %vm398 = vcmp.eq.s32.totalorder %v34, %v397
    %vm399 = vmpackc.low %vm398, %vm398
    %vm400 = vmpackc.even %vm399, %vm399
    %v401 = vsel %vm400, 16843009, 0
    %402 = vst.msk [vmem:[#allocation5 + $0x2] sm:$0x1] %vm42, %v401
    %403 = vset.pattern.permute.xlu0 17
    %404 = vperm.xlu0 %403, %v32
    %v405 = vpop.permute.xlu0 %404
    %vm406 = vcmp.eq.s32.totalorder %v34, %v405
    %vm407 = vmpackc.low %vm406, %vm406
    %vm408 = vmpackc.even %vm407, %vm407
    %v409 = vsel %vm408, 16843009, 0
    %v411 = vunpack.c.l.s4 1966171168
    %v412 = vunpack.c.0.s8 %v411
    %v413 = vlaneseq
    %v414 = vshrl.u32 %v413, 7
    %v415 = vsub.s32 %v412, %v414
    %v416 = vrot.slane %v409, %v415
    %v418 = vunpack.c.l.s4 1966171168
    %v419 = vunpack.c.0.s8 %v418
    %v420 = vlaneseq
    %v421 = vshrl.u32 %v420, 7
    %v422 = vsub.s32 %v419, %v421
    %v423 = vrot.slane %v416, %v422
    %424 = vrot.lane.b32.xlu0 %v423, 16
    %v425 = vpop.permute.xlu0 %424
    %426 = vst.msk [vmem:[#allocation5 + $0x2] sm:$0x1] %vm67, %v425
    %427 = vset.pattern.permute.xlu0 18
    %428 = vperm.xlu0 %427, %v32
    %v429 = vpop.permute.xlu0 %428
    %vm430 = vcmp.eq.s32.totalorder %v34, %v429
    %vm431 = vmpackc.low %vm430, %vm430
    %vm432 = vmpackc.even %vm431, %vm431
    %v433 = vsel %vm432, 16843009, 0
    %v435 = vunpack.c.l.s4 1966171168
    %v436 = vunpack.c.0.s8 %v435
    %v437 = vlaneseq
    %v438 = vshrl.u32 %v437, 7
    %v439 = vsub.s32 %v436, %v438
    %v440 = vrot.slane %v433, %v439
    %v442 = vunpack.c.l.s4 1966171168
    %v443 = vunpack.c.0.s8 %v442
    %v444 = vlaneseq
    %v445 = vshrl.u32 %v444, 7
    %v446 = vsub.s32 %v443, %v445
    %v447 = vrot.slane %v440, %v446
    %448 = vrot.lane.b32.xlu0 %v447, 32
    %v449 = vpop.permute.xlu0 %448
    %450 = vst.msk [vmem:[#allocation5 + $0x2] sm:$0x1] %vm92, %v449
    %451 = vset.pattern.permute.xlu0 19
    %452 = vperm.xlu0 %451, %v32
    %v453 = vpop.permute.xlu0 %452
    %vm454 = vcmp.eq.s32.totalorder %v34, %v453
    %vm455 = vmpackc.low %vm454, %vm454
    %vm456 = vmpackc.even %vm455, %vm455
    %v457 = vsel %vm456, 16843009, 0
    %v459 = vunpack.c.l.s4 1966171168
    %v460 = vunpack.c.0.s8 %v459
    %v461 = vlaneseq
    %v462 = vshrl.u32 %v461, 7
    %v463 = vsub.s32 %v460, %v462
    %v464 = vrot.slane %v457, %v463
    %v466 = vunpack.c.l.s4 1966171168
    %v467 = vunpack.c.0.s8 %v466
    %v468 = vlaneseq
    %v469 = vshrl.u32 %v468, 7
    %v470 = vsub.s32 %v467, %v469
    %v471 = vrot.slane %v464, %v470
    %472 = vrot.lane.b32.xlu0 %v471, 48
    %v473 = vpop.permute.xlu0 %472
    %474 = vst.msk [vmem:[#allocation5 + $0x2] sm:$0x1] %vm117, %v473
    %475 = vset.pattern.permute.xlu0 20
    %476 = vperm.xlu0 %475, %v32
    %v477 = vpop.permute.xlu0 %476
    %vm478 = vcmp.eq.s32.totalorder %v34, %v477
    %vm479 = vmpackc.low %vm478, %vm478
    %vm480 = vmpackc.even %vm479, %vm479
    %v481 = vsel %vm480, 16843009, 0
    %v483 = vunpack.c.l.s4 1966171168
    %v484 = vunpack.c.0.s8 %v483
    %v485 = vlaneseq
    %v486 = vshrl.u32 %v485, 7
    %v487 = vsub.s32 %v484, %v486
    %v488 = vrot.slane %v481, %v487
    %v490 = vunpack.c.l.s4 1966171168
    %v491 = vunpack.c.0.s8 %v490
    %v492 = vlaneseq
    %v493 = vshrl.u32 %v492, 7
    %v494 = vsub.s32 %v491, %v493
    %v495 = vrot.slane %v488, %v494
    %496 = vrot.lane.b32.xlu0 %v495, 64
    %v497 = vpop.permute.xlu0 %496
    %498 = vst.msk [vmem:[#allocation5 + $0x2] sm:$0x1] %vm142, %v497
    %499 = vset.pattern.permute.xlu0 21
    %500 = vperm.xlu0 %499, %v32
    %v501 = vpop.permute.xlu0 %500
    %vm502 = vcmp.eq.s32.totalorder %v34, %v501
    %vm503 = vmpackc.low %vm502, %vm502
    %vm504 = vmpackc.even %vm503, %vm503
    %v505 = vsel %vm504, 16843009, 0
    %v507 = vunpack.c.l.s4 1966171168
    %v508 = vunpack.c.0.s8 %v507
    %v509 = vlaneseq
    %v510 = vshrl.u32 %v509, 7
    %v511 = vsub.s32 %v508, %v510
    %v512 = vrot.slane %v505, %v511
    %v514 = vunpack.c.l.s4 1966171168
    %v515 = vunpack.c.0.s8 %v514
    %v516 = vlaneseq
    %v517 = vshrl.u32 %v516, 7
    %v518 = vsub.s32 %v515, %v517
    %v519 = vrot.slane %v512, %v518
    %520 = vrot.lane.b32.xlu0 %v519, 80
    %v521 = vpop.permute.xlu0 %520
    %522 = vst.msk [vmem:[#allocation5 + $0x2] sm:$0x1] %vm167, %v521
    %523 = vset.pattern.permute.xlu0 22
    %524 = vperm.xlu0 %523, %v32
    %v525 = vpop.permute.xlu0 %524
    %vm526 = vcmp.eq.s32.totalorder %v34, %v525
    %vm527 = vmpackc.low %vm526, %vm526
    %vm528 = vmpackc.even %vm527, %vm527
    %v529 = vsel %vm528, 16843009, 0
    %v531 = vunpack.c.l.s4 1966171168
    %v532 = vunpack.c.0.s8 %v531
    %v533 = vlaneseq
    %v534 = vshrl.u32 %v533, 7
    %v535 = vsub.s32 %v532, %v534
    %v536 = vrot.slane %v529, %v535
    %v538 = vunpack.c.l.s4 1966171168
    %v539 = vunpack.c.0.s8 %v538
    %v540 = vlaneseq
    %v541 = vshrl.u32 %v540, 7
    %v542 = vsub.s32 %v539, %v541
    %v543 = vrot.slane %v536, %v542
    %544 = vrot.lane.b32.xlu0 %v543, 96
    %v545 = vpop.permute.xlu0 %544
    %546 = vst.msk [vmem:[#allocation5 + $0x2] sm:$0x1] %vm192, %v545
    %547 = vset.pattern.permute.xlu0 23
    %548 = vperm.xlu0 %547, %v32
    %v549 = vpop.permute.xlu0 %548
    %vm550 = vcmp.eq.s32.totalorder %v34, %v549
    %vm551 = vmpackc.low %vm550, %vm550
    %vm552 = vmpackc.even %vm551, %vm551
    %v553 = vsel %vm552, 16843009, 0
    %v555 = vunpack.c.l.s4 1966171168
    %v556 = vunpack.c.0.s8 %v555
    %v557 = vlaneseq
    %v558 = vshrl.u32 %v557, 7
    %v559 = vsub.s32 %v556, %v558
    %v560 = vrot.slane %v553, %v559
    %v562 = vunpack.c.l.s4 1966171168
    %v563 = vunpack.c.0.s8 %v562
    %v564 = vlaneseq
    %v565 = vshrl.u32 %v564, 7
    %v566 = vsub.s32 %v563, %v565
    %v567 = vrot.slane %v560, %v566
    %568 = vrot.lane.b32.xlu0 %v567, 112
    %v569 = vpop.permute.xlu0 %568
    %570 = vst.msk [vmem:[#allocation5 + $0x2] sm:$0x1] %vm217, %v569
    // Predicated region
    $region10: #{tpu_custom_call.1} parent=1 // pred_check
      _
    $region11: #{tpu_custom_call.1} parent=1 // pred_check_branch
      %572 = sbr.rel (0) target = $region13
    $region12: #{tpu_custom_call.1} parent=1 // pred_region
      %s574 = ssub.s32 48, 48
      %575 = vsyncadd [#allocation4], %s574
      %s577 = sshll.u32 [#allocation5], 4
      %s578 = int_to_ptr.vmem [resolvable:$true] %s577
      %580 = dma.vmem_to_hbm [thread:$0]  %s578, 48, %s1, [#allocation4]
    $region13: #{tpu_custom_call.1} parent=1 // pred_fallthru
      _
    // Predicated region
    $region14: #{tpu_custom_call.1} parent=1 // pred_check
      _
    $region15: #{tpu_custom_call.1} parent=1 // pred_check_branch
      %582 = sbr.rel (0) target = $region17
    $region16: #{tpu_custom_call.1} parent=1 // pred_region
      %583 = dma.done [#allocation4], 48
    $region17: #{tpu_custom_call.1} parent=1 // pred_fallthru
      _
    %584 = vsyncpa [#allocation3], 1
    %585 = vsyncpa [#allocation4], 1

</llo_original>
